<compile_context>
chip_gen: v5e
topology: v5e:2x2
jax: 0.10.0
libtpu: 0.0.40
codegen_flags: <defaults>
</compile_context>

<pallas_src>
import functools

import jax
import jax.numpy as jnp
from jax.experimental import pallas as pl
from jax.experimental.pallas import tpu as pltpu


def _round_up(x, m):
    return ((x + m - 1) // m) * m


# ---------------------------------------------------------------------------
# One fused RGCN layer: relation transforms -> stacked-K aggregation ->
# root + bias (-> ReLU -> dropout), tiled over destination rows.
# ---------------------------------------------------------------------------
def _rgcn_layer_kernel(a_ref, xfull_ref, xtile_ref, w_ref, wr_ref, b_ref,
                       *rest, num_rel, n_pad, relu_dropout):
    if relu_dropout:
        drop_ref, o_ref, xw_ref = rest
    else:
        o_ref, xw_ref = rest

    # Stage per-relation transforms X @ W_r into the persistent VMEM scratch,
    # stacked along rows (so aggregation is one matmul with K = R * N_pad).
    # Computed once, on the first destination-row tile; scratch persists
    # across grid steps.
    @pl.when(pl.program_id(0) == 0)
    def _():
        x = xfull_ref[...]                                   # (N_pad, Din) bf16
        for r in range(num_rel):
            xw_ref[pl.ds(r * n_pad, n_pad), :] = jnp.dot(
                x, w_ref[r], preferred_element_type=jnp.float32
            ).astype(jnp.bfloat16)

    # Aggregation over all relations/neighbors for this tile of destinations,
    # plus root transform and bias, accumulated in f32.
    acc = jnp.dot(a_ref[...], xw_ref[...], preferred_element_type=jnp.float32)
    acc = acc + jnp.dot(xtile_ref[...], wr_ref[...],
                        preferred_element_type=jnp.float32)
    acc = acc + b_ref[...]

    if relu_dropout:
        # Keep-mask is pre-scaled by 1/keep_prob (bf16); f32 epilogue.
        acc = jnp.maximum(acc, 0.0) * drop_ref[...].astype(jnp.float32)

    o_ref[...] = acc.astype(o_ref.dtype)                     # lane-dense store


def _rgcn_layer(a_ext, x, w, w_root, b, drop, *, n_pad, tm, num_rel,
                relu_dropout, out_dtype):
    k = num_rel * n_pad
    din = x.shape[1]
    dout = w.shape[2]
    grid = (n_pad // tm,)

    in_specs = [
        pl.BlockSpec((tm, k), lambda i: (i, 0)),                 # A_ext row tile
        pl.BlockSpec((n_pad, din), lambda i: (0, 0)),            # X (all sources)
        pl.BlockSpec((tm, din), lambda i: (i, 0)),               # X tile (root)
        pl.BlockSpec((num_rel, din, dout), lambda i: (0, 0, 0)),  # W_r stack
        pl.BlockSpec((din, dout), lambda i: (0, 0)),             # W_root
        pl.BlockSpec((1, dout), lambda i: (0, 0)),               # bias
    ]
    args = [a_ext, x, x, w, w_root, b]
    if relu_dropout:
        in_specs.append(pl.BlockSpec((tm, dout), lambda i: (i, 0)))  # keep-mask
        args.append(drop)

    # Explicit scoped-VMEM budget: actual demand (double-buffered A tile +
    # weights + xw scratch + activations) with headroom, capped at 48 MiB so
    # the same setting stays safe on v7x's 64 MiB physical VMEM.
    need = (2 * tm * k * 2 + n_pad * din * 2 + 2 * tm * din * 2
            + (num_rel + 1) * din * dout * 2 + dout * 4
            + k * dout * 2 + 4 * tm * dout * 4)
    vmem_limit = int(min(max(2 * need, 32 << 20), 48 << 20))

    flops = 2 * (num_rel * n_pad * din * dout     # relation transforms
                 + n_pad * k * dout               # aggregation
                 + n_pad * din * dout)            # root
    bytes_accessed = int(n_pad * k * 2 + 2 * n_pad * din * 2
                         + (num_rel + 1) * din * dout * 2 + dout * 4
                         + n_pad * dout * (2 if out_dtype == jnp.bfloat16 else 4))

    kernel = functools.partial(_rgcn_layer_kernel, num_rel=num_rel,
                               n_pad=n_pad, relu_dropout=relu_dropout)

    return pl.pallas_call(
        kernel,
        out_shape=jax.ShapeDtypeStruct((n_pad, dout), out_dtype),
        grid=grid,
        in_specs=in_specs,
        out_specs=pl.BlockSpec((tm, dout), lambda i: (i, 0)),
        scratch_shapes=[pltpu.VMEM((k, dout), jnp.bfloat16)],   # stacked X@W_r
        compiler_params=pltpu.CompilerParams(
            dimension_semantics=("arbitrary",),
            vmem_limit_bytes=vmem_limit),
        cost_estimate=pl.CostEstimate(flops=int(flops), transcendentals=0,
                                      bytes_accessed=bytes_accessed),
    )(*args)


# ---------------------------------------------------------------------------
# Glue: adjacency build + 2-layer forward wrapper
# ---------------------------------------------------------------------------
def build_rel_adjacency(edge_index, edge_type, n_pad, num_relations):
    """A_ext[dst, r*n_pad + src] = 1/|{j : (j->dst) rel r}|  (mean aggr)."""
    src, dst = edge_index[0], edge_index[1]
    a = jnp.zeros((num_relations, n_pad, n_pad), jnp.float32)
    a = a.at[edge_type, dst, src].add(1.0)
    deg = a.sum(axis=-1, keepdims=True)
    a = a / jnp.maximum(deg, 1.0)
    return a.transpose(1, 0, 2).reshape(n_pad, num_relations * n_pad)


def rgcn_forward(x, edge_index, edge_type, params, *, num_nodes, num_relations,
                 dropout_p=0.2, dropout_key=None):
    N, R = num_nodes, num_relations
    Din = params["W1"].shape[1]
    D1 = params["W1"].shape[2]
    D2 = params["W2"].shape[2]

    # Lane-dense padding of feature dims; destination-row tile TM.
    n_pad = _round_up(N, 16)
    tm = min(256, n_pad)
    n_pad = _round_up(n_pad, tm)
    din_p = _round_up(Din, 128)
    d1_p = _round_up(D1, 128)
    d2_p = _round_up(D2, 128)

    # [A_0 | ... | A_{R-1}]  (no identity block; root handled as dense matmul)
    a_ext = build_rel_adjacency(edge_index, edge_type, n_pad, R
                                ).astype(jnp.bfloat16)

    x_p = jnp.zeros((n_pad, din_p), jnp.bfloat16).at[:N, :Din].set(
        x.astype(jnp.bfloat16))
    w1 = jnp.zeros((R, din_p, d1_p), jnp.bfloat16).at[:, :Din, :D1].set(
        params["W1"].astype(jnp.bfloat16))
    w1r = jnp.zeros((din_p, d1_p), jnp.bfloat16).at[:Din, :D1].set(
        params["W1_root"].astype(jnp.bfloat16))
    b1 = jnp.zeros((1, d1_p), jnp.float32).at[0, :D1].set(
        params["b1"].astype(jnp.float32))
    w2 = jnp.zeros((R, d1_p, d2_p), jnp.bfloat16).at[:, :D1, :D2].set(
        params["W2"].astype(jnp.bfloat16))
    w2r = jnp.zeros((d1_p, d2_p), jnp.bfloat16).at[:D1, :D2].set(
        params["W2_root"].astype(jnp.bfloat16))
    b2 = jnp.zeros((1, d2_p), jnp.float32).at[0, :D2].set(
        params["b2"].astype(jnp.float32))

    # Dropout keep-mask, pre-scaled by 1/keep_prob, shipped as bf16.
    # TODO(synk): generate in-kernel with pltpu.prng_seed/prng_random_bits on
    # hardware to drop this O(N*D1) HBM stream entirely.
    if dropout_p > 0.0:
        if dropout_key is None:
            dropout_key = jax.random.PRNGKey(0)
        keep = jax.random.bernoulli(dropout_key, 1.0 - dropout_p, (N, D1))
        scaled = (keep.astype(jnp.float32) / (1.0 - dropout_p)).astype(jnp.bfloat16)
        drop = jnp.zeros((n_pad, d1_p), jnp.bfloat16).at[:N, :D1].set(scaled)
    else:
        drop = jnp.ones((n_pad, d1_p), jnp.bfloat16)

    h1 = _rgcn_layer(a_ext, x_p, w1, w1r, b1, drop,
                     n_pad=n_pad, tm=tm, num_rel=R,
                     relu_dropout=True, out_dtype=jnp.bfloat16)
    out = _rgcn_layer(a_ext, h1, w2, w2r, b2, None,
                      n_pad=n_pad, tm=tm, num_rel=R,
                      relu_dropout=False, out_dtype=jnp.float32)
    return out[:N, :D2]


# ---------------------------------------------------------------------------
# Pure-JAX f32 reference (no dropout) for a correctness spot-check.
# ---------------------------------------------------------------------------
def _rgcn_conv_ref(A, x, W, W_root, b, relu=False):
    out = x @ W_root + b[None, :]
    xw = jnp.einsum("nk,rkd->rnd", x, W)
    out = out + jnp.einsum("rnm,rmd->nd", A, xw)
    return jnp.maximum(out, 0.0) if relu else out


def _rgcn2_ref(edge_index, edge_type, x, params, *, num_nodes, num_relations):
    src, dst = edge_index[0], edge_index[1]
    A = jnp.zeros((num_relations, num_nodes, num_nodes), jnp.float32)
    A = A.at[edge_type, dst, src].add(1.0)
    A = A / jnp.maximum(A.sum(-1, keepdims=True), 1.0)
    h1 = _rgcn_conv_ref(A, x, params["W1"], params["W1_root"], params["b1"], relu=True)
    return _rgcn_conv_ref(A, h1, params["W2"], params["W2_root"], params["b2"], relu=False)


if __name__ == "__main__":
    # Small, module-consistent shapes: embed_dim=32, out_dims={64,128}, num_rels=4.
    N, E = 32, 64
    IN_DIM, D1, D2, R = 32, 64, 128, 4

    key = jax.random.PRNGKey(0)
    k = iter(jax.random.split(key, 12))

    feats = jax.random.normal(next(k), (N, IN_DIM), dtype=jnp.float32)
    einds = jax.random.randint(next(k), (2, E), 0, N, dtype=jnp.int32)
    rels = jax.random.randint(next(k), (E,), 0, R, dtype=jnp.int32)

    params = {
        "W1": jax.random.normal(next(k), (R, IN_DIM, D1), jnp.float32) * 0.1,
        "W1_root": jax.random.normal(next(k), (IN_DIM, D1), jnp.float32) * 0.1,
        "b1": jax.random.normal(next(k), (D1,), jnp.float32) * 0.1,
        "W2": jax.random.normal(next(k), (R, D1, D2), jnp.float32) * 0.1,
        "W2_root": jax.random.normal(next(k), (D1, D2), jnp.float32) * 0.1,
        "b2": jax.random.normal(next(k), (D2,), jnp.float32) * 0.1,
    }

    # Correctness check with dropout disabled (bf16 MXU inputs -> loose
    # tolerance vs the f32 reference).
    out_k = rgcn_forward(feats, einds, rels, params, num_nodes=N,
                         num_relations=R, dropout_p=0.0)
    out_ref = _rgcn2_ref(einds, rels, feats, params, num_nodes=N, num_relations=R)
    jax.block_until_ready(out_k)
    assert out_k.shape == (N, D2)
    assert jnp.allclose(out_k, out_ref, rtol=5e-2, atol=5e-2), (
        float(jnp.max(jnp.abs(out_k - out_ref))))

    # Full forward with dropout active (as in the PyTorch module's forward).
    out = rgcn_forward(feats, einds, rels, params, num_nodes=N,
                       num_relations=R, dropout_p=0.2,
                       dropout_key=jax.random.PRNGKey(1234))
    jax.block_until_ready(out)
    assert out.shape == (N, D2)
    print("KERNEL_OK")
</pallas_src>

<mosaic_0001>
module attributes {stable_mosaic.version = 11 : i64} {
  func.func @_rgcn_layer_kernel(%arg0: i32, %arg1: memref<32x128xbf16, #tpu.memory_space<vmem>>, %arg2: memref<32x128xbf16, #tpu.memory_space<vmem>>, %arg3: memref<32x128xbf16, #tpu.memory_space<vmem>>, %arg4: memref<4x128x128xbf16, #tpu.memory_space<vmem>>, %arg5: memref<128x128xbf16, #tpu.memory_space<vmem>>, %arg6: memref<1x128xf32, #tpu.memory_space<vmem>>, %arg7: memref<32x128xbf16, #tpu.memory_space<vmem>>, %arg8: memref<32x128xbf16, #tpu.memory_space<vmem>>, %arg9: memref<128x128xbf16, #tpu.memory_space<vmem>>) attributes {dimension_semantics = [#tpu.dimension_semantics<arbitrary>], iteration_bounds = array<i64: 1>, scalar_prefetch = 0 : i64, scratch_operands = 1 : i64, tpu.core_type = #tpu.core_type<tc>, window_params = [{transform_indices = @transform_0, window_bounds = array<i64: 32, 128>}, {pipeline_mode = #tpu.pipeline_mode<synchronous>, transform_indices = @transform_1, window_bounds = array<i64: 32, 128>}, {transform_indices = @transform_2, window_bounds = array<i64: 32, 128>}, {pipeline_mode = #tpu.pipeline_mode<synchronous>, transform_indices = @transform_3, window_bounds = array<i64: 4, 128, 128>}, {pipeline_mode = #tpu.pipeline_mode<synchronous>, transform_indices = @transform_4, window_bounds = array<i64: 128, 128>}, {pipeline_mode = #tpu.pipeline_mode<synchronous>, transform_indices = @transform_5, window_bounds = array<i64: 1, 128>}, {transform_indices = @transform_6, window_bounds = array<i64: 32, 128>}, {transform_indices = @transform_7, window_bounds = array<i64: 32, 128>}]} {
    %c0_i32 = arith.constant 0 : i32
    %0 = arith.cmpi eq, %arg0, %c0_i32 : i32
    %1 = arith.extui %0 : i1 to i32
    %c0_i32_0 = arith.constant 0 : i32
    %2 = arith.cmpi ne, %1, %c0_i32_0 : i32
    scf.if %2 {
      %c0_16 = arith.constant 0 : index
      %c0_17 = arith.constant 0 : index
      %20 = vector.load %arg2[%c0_16, %c0_17] : memref<32x128xbf16, #tpu.memory_space<vmem>>, vector<32x128xbf16>
      %c0_18 = arith.constant 0 : index
      %c0_19 = arith.constant 0 : index
      %c0_20 = arith.constant 0 : index
      %21 = vector.load %arg4[%c0_18, %c0_19, %c0_20] : memref<4x128x128xbf16, #tpu.memory_space<vmem>>, vector<1x128x128xbf16>
      %22 = vector.shape_cast %21 : vector<1x128x128xbf16> to vector<128x128xbf16>
      %cst_21 = arith.constant dense<0.000000e+00> : vector<32x128xf32>
      %23 = tpu.matmul %20, %22, %cst_21 {dimension_numbers = #tpu.dot_dimension_numbers<[1], [0], [0], [1], [0, 0, 1, 1], [], []>} : vector<32x128xbf16>, vector<128x128xbf16>, vector<32x128xf32> -> vector<32x128xf32>
      %24 = arith.truncf %23 : vector<32x128xf32> to vector<32x128xbf16>
      %c0_22 = arith.constant 0 : index
      %c0_23 = arith.constant 0 : index
      %25 = vector.load %arg9[%c0_22, %c0_23] : memref<128x128xbf16, #tpu.memory_space<vmem>>, vector<32x128xbf16>
      tpu.vector_store %arg9[%c0_22, %c0_23], %24 {strides = array<i32>} : memref<128x128xbf16, #tpu.memory_space<vmem>>, vector<32x128xbf16>,
      %c1 = arith.constant 1 : index
      %c0_24 = arith.constant 0 : index
      %c0_25 = arith.constant 0 : index
      %26 = vector.load %arg4[%c1, %c0_24, %c0_25] : memref<4x128x128xbf16, #tpu.memory_space<vmem>>, vector<1x128x128xbf16>
      %27 = vector.shape_cast %26 : vector<1x128x128xbf16> to vector<128x128xbf16>
      %cst_26 = arith.constant dense<0.000000e+00> : vector<32x128xf32>
      %28 = tpu.matmul %20, %27, %cst_26 {dimension_numbers = #tpu.dot_dimension_numbers<[1], [0], [0], [1], [0, 0, 1, 1], [], []>} : vector<32x128xbf16>, vector<128x128xbf16>, vector<32x128xf32> -> vector<32x128xf32>
      %29 = arith.truncf %28 : vector<32x128xf32> to vector<32x128xbf16>
      %c32 = arith.constant 32 : index
      %c0_27 = arith.constant 0 : index
      %30 = vector.load %arg9[%c32, %c0_27] : memref<128x128xbf16, #tpu.memory_space<vmem>>, vector<32x128xbf16>
      tpu.vector_store %arg9[%c32, %c0_27], %29 {strides = array<i32>} : memref<128x128xbf16, #tpu.memory_space<vmem>>, vector<32x128xbf16>,
      %c2 = arith.constant 2 : index
      %c0_28 = arith.constant 0 : index
      %c0_29 = arith.constant 0 : index
      %31 = vector.load %arg4[%c2, %c0_28, %c0_29] : memref<4x128x128xbf16, #tpu.memory_space<vmem>>, vector<1x128x128xbf16>
      %32 = vector.shape_cast %31 : vector<1x128x128xbf16> to vector<128x128xbf16>
      %cst_30 = arith.constant dense<0.000000e+00> : vector<32x128xf32>
      %33 = tpu.matmul %20, %32, %cst_30 {dimension_numbers = #tpu.dot_dimension_numbers<[1], [0], [0], [1], [0, 0, 1, 1], [], []>} : vector<32x128xbf16>, vector<128x128xbf16>, vector<32x128xf32> -> vector<32x128xf32>
      %34 = arith.truncf %33 : vector<32x128xf32> to vector<32x128xbf16>
      %c64 = arith.constant 64 : index
      %c0_31 = arith.constant 0 : index
      %35 = vector.load %arg9[%c64, %c0_31] : memref<128x128xbf16, #tpu.memory_space<vmem>>, vector<32x128xbf16>
      tpu.vector_store %arg9[%c64, %c0_31], %34 {strides = array<i32>} : memref<128x128xbf16, #tpu.memory_space<vmem>>, vector<32x128xbf16>,
      %c3 = arith.constant 3 : index
      %c0_32 = arith.constant 0 : index
      %c0_33 = arith.constant 0 : index
      %36 = vector.load %arg4[%c3, %c0_32, %c0_33] : memref<4x128x128xbf16, #tpu.memory_space<vmem>>, vector<1x128x128xbf16>
      %37 = vector.shape_cast %36 : vector<1x128x128xbf16> to vector<128x128xbf16>
      %cst_34 = arith.constant dense<0.000000e+00> : vector<32x128xf32>
      %38 = tpu.matmul %20, %37, %cst_34 {dimension_numbers = #tpu.dot_dimension_numbers<[1], [0], [0], [1], [0, 0, 1, 1], [], []>} : vector<32x128xbf16>, vector<128x128xbf16>, vector<32x128xf32> -> vector<32x128xf32>
      %39 = arith.truncf %38 : vector<32x128xf32> to vector<32x128xbf16>
      %c96 = arith.constant 96 : index
      %c0_35 = arith.constant 0 : index
      %40 = vector.load %arg9[%c96, %c0_35] : memref<128x128xbf16, #tpu.memory_space<vmem>>, vector<32x128xbf16>
      tpu.vector_store %arg9[%c96, %c0_35], %39 {strides = array<i32>} : memref<128x128xbf16, #tpu.memory_space<vmem>>, vector<32x128xbf16>,
    } else {
    }
    %c0 = arith.constant 0 : index
    %c0_1 = arith.constant 0 : index
    %3 = vector.load %arg1[%c0, %c0_1] : memref<32x128xbf16, #tpu.memory_space<vmem>>, vector<32x128xbf16>
    %c0_2 = arith.constant 0 : index
    %c0_3 = arith.constant 0 : index
    %4 = vector.load %arg9[%c0_2, %c0_3] : memref<128x128xbf16, #tpu.memory_space<vmem>>, vector<128x128xbf16>
    %cst = arith.constant dense<0.000000e+00> : vector<32x128xf32>
    %5 = tpu.matmul %3, %4, %cst {dimension_numbers = #tpu.dot_dimension_numbers<[1], [0], [0], [1], [0, 0, 1, 1], [], []>} : vector<32x128xbf16>, vector<128x128xbf16>, vector<32x128xf32> -> vector<32x128xf32>
    %c0_4 = arith.constant 0 : index
    %c0_5 = arith.constant 0 : index
    %6 = vector.load %arg3[%c0_4, %c0_5] : memref<32x128xbf16, #tpu.memory_space<vmem>>, vector<32x128xbf16>
    %c0_6 = arith.constant 0 : index
    %c0_7 = arith.constant 0 : index
    %7 = vector.load %arg5[%c0_6, %c0_7] : memref<128x128xbf16, #tpu.memory_space<vmem>>, vector<128x128xbf16>
    %cst_8 = arith.constant dense<0.000000e+00> : vector<32x128xf32>
    %8 = tpu.matmul %6, %7, %cst_8 {dimension_numbers = #tpu.dot_dimension_numbers<[1], [0], [0], [1], [0, 0, 1, 1], [], []>} : vector<32x128xbf16>, vector<128x128xbf16>, vector<32x128xf32> -> vector<32x128xf32>
    %9 = arith.addf %5, %8 : vector<32x128xf32>
    %c0_9 = arith.constant 0 : index
    %c0_10 = arith.constant 0 : index
    %10 = vector.load %arg6[%c0_9, %c0_10] : memref<1x128xf32, #tpu.memory_space<vmem>>, vector<1x128xf32>
    %11 = vector.broadcast %10 : vector<1x128xf32> to vector<32x128xf32>
    %12 = arith.addf %9, %11 : vector<32x128xf32>
    %cst_11 = arith.constant 0.000000e+00 : f32
    %13 = vector.broadcast %cst_11 : f32 to vector<32x128xf32>
    %14 = arith.maximumf %12, %13 : vector<32x128xf32>
    %c0_12 = arith.constant 0 : index
    %c0_13 = arith.constant 0 : index
    %15 = vector.load %arg7[%c0_12, %c0_13] : memref<32x128xbf16, #tpu.memory_space<vmem>>, vector<32x128xbf16>
    %16 = arith.extf %15 : vector<32x128xbf16> to vector<32x128xf32>
    %17 = arith.mulf %14, %16 : vector<32x128xf32>
    %18 = arith.truncf %17 : vector<32x128xf32> to vector<32x128xbf16>
    %c0_14 = arith.constant 0 : index
    %c0_15 = arith.constant 0 : index
    %19 = vector.load %arg8[%c0_14, %c0_15] : memref<32x128xbf16, #tpu.memory_space<vmem>>, vector<32x128xbf16>
    tpu.vector_store %arg8[%c0_14, %c0_15], %18 {strides = array<i32>} : memref<32x128xbf16, #tpu.memory_space<vmem>>, vector<32x128xbf16>,
    return
  }
  func.func @transform_0(%arg0: i32) -> (i32, i32) {
    %c0_i32 = arith.constant 0 : i32
    %c0_i32_0 = arith.constant 0 : i32
    return %arg0, %c0_i32 : i32, i32
  }
  func.func @transform_1(%arg0: i32) -> (i32, i32) {
    %c0_i32 = arith.constant 0 : i32
    %c0_i32_0 = arith.constant 0 : i32
    %c0_i32_1 = arith.constant 0 : i32
    return %c0_i32, %c0_i32_0 : i32, i32
  }
  func.func @transform_2(%arg0: i32) -> (i32, i32) {
    %c0_i32 = arith.constant 0 : i32
    %c0_i32_0 = arith.constant 0 : i32
    return %arg0, %c0_i32 : i32, i32
  }
  func.func @transform_3(%arg0: i32) -> (i32, i32, i32) {
    %c0_i32 = arith.constant 0 : i32
    %c0_i32_0 = arith.constant 0 : i32
    %c0_i32_1 = arith.constant 0 : i32
    %c0_i32_2 = arith.constant 0 : i32
    return %c0_i32, %c0_i32_0, %c0_i32_1 : i32, i32, i32
  }
  func.func @transform_4(%arg0: i32) -> (i32, i32) {
    %c0_i32 = arith.constant 0 : i32
    %c0_i32_0 = arith.constant 0 : i32
    %c0_i32_1 = arith.constant 0 : i32
    return %c0_i32, %c0_i32_0 : i32, i32
  }
  func.func @transform_5(%arg0: i32) -> (i32, i32) {
    %c0_i32 = arith.constant 0 : i32
    %c0_i32_0 = arith.constant 0 : i32
    %c0_i32_1 = arith.constant 0 : i32
    return %c0_i32, %c0_i32_0 : i32, i32
  }
  func.func @transform_6(%arg0: i32) -> (i32, i32) {
    %c0_i32 = arith.constant 0 : i32
    %c0_i32_0 = arith.constant 0 : i32
    return %arg0, %c0_i32 : i32, i32
  }
  func.func @transform_7(%arg0: i32) -> (i32, i32) {
    %c0_i32 = arith.constant 0 : i32
    %c0_i32_0 = arith.constant 0 : i32
    return %arg0, %c0_i32 : i32, i32
  }
}

</mosaic_0001>

<llo_original>
// kernel: tpu_custom_call.1
$region0: #{tpu_custom_call.1}
  #allocation0 [shape = 'u32[]', space=smem, size = 0x4, offset = 0x4, fixed_abs, tag = 'smem constant byte address 0x4 - core index']
  #allocation1 [shape = 'u32[72,128]{1,0:T(1,128)}', space=vmem, size = 0x9000, scoped, tag = 'internal scratch']
  #allocation2 [shape = 'bf16[128,128]{1,0:T(8,128)(2,1)}', space=vmem, size = 0x8000, scoped, tag = 'scratch operand']
  %s0 = inlined_call_operand.hbm [shape: bf16[32,128], index: 0, kind: input, shape index: {}]
  %s1 = inlined_call_operand.hbm [shape: bf16[32,128], index: 1, kind: input, shape index: {}]
  %s2 = inlined_call_operand.hbm [shape: bf16[32,128], index: 2, kind: input, shape index: {}]
  %s3 = inlined_call_operand.hbm [shape: bf16[4,128,128], index: 3, kind: input, shape index: {}]
  %s4 = inlined_call_operand.hbm [shape: bf16[128,128], index: 4, kind: input, shape index: {}]
  %s5 = inlined_call_operand.vmem [shape: f32[1,128], index: 5, kind: input, shape index: {}]
  %s6 = inlined_call_operand.hbm [shape: bf16[32,128], index: 6, kind: input, shape index: {}]
  %s7 = inlined_call_operand.hbm [shape: bf16[32,128], index: 7, kind: output, shape index: {}]
  %s8 = sld [smem:[#allocation0]]
  $region66: #{tpu_custom_call.1} parent=0
    _
  %s10 = ssub.s32 1, %s8
  %s11 = scalar_select 0, %s10, %s8
  $region1: #{tpu_custom_call.1} parent=0
    #allocation3 [shape = 'u8[8192]{0}', space=vmem, size = 0x2000, scoped, tag = 'input window, operand 0, single buffered']
    #allocation4 [shape = 's32[1]{0}', space=sflag, size = 0x4, scoped, tag = 'scoped memory for tpu_custom_call.1']
    #allocation5 [shape = 's32[1]{0}', space=sflag, size = 0x4, scoped, tag = 'scoped memory for tpu_custom_call.1']
    #allocation6 [shape = 'u8[8192]{0}', space=vmem, size = 0x2000, scoped, tag = 'input window, operand 1, single buffered']
    #allocation7 [shape = 's32[1]{0}', space=sflag, size = 0x4, scoped, tag = 'scoped memory for tpu_custom_call.1']
    #allocation8 [shape = 'u8[8192]{0}', space=vmem, size = 0x2000, scoped, tag = 'input window, operand 2, single buffered']
    #allocation9 [shape = 'u8[131072]{0}', space=vmem, size = 0x20000, scoped, tag = 'input window, operand 3, single buffered']
    #allocation10 [shape = 's32[1]{0}', space=sflag, size = 0x4, scoped, tag = 'scoped memory for tpu_custom_call.1']
    #allocation11 [shape = 'u8[32768]{0}', space=vmem, size = 0x8000, scoped, tag = 'input window, operand 4, single buffered']
    #allocation12 [shape = 'u8[8192]{0}', space=vmem, size = 0x2000, scoped, tag = 'input window, operand 6, single buffered']
    #allocation13 [shape = 's32[1]{0}', space=sflag, size = 0x4, scoped, tag = 'scoped memory for tpu_custom_call.1']
    #allocation14 [shape = 'u8[8192]{0}', space=vmem, size = 0x2000, scoped, tag = 'output window, operand 0, single buffered']
    %12 = vsyncpa [#allocation4], 0
    %13 = vsyncpa [#allocation7], 0
    %14 = vsyncpa [#allocation10], 0
    %15 = vsyncpa [#allocation13], 0
    %16 = vsyncpa [#allocation5], 0
    // Predicated region
    $region2: #{tpu_custom_call.1} parent=1 // pred_check
      _
    $region3: #{tpu_custom_call.1} parent=1 // pred_check_branch
      %18 = sbr.rel (0) target = $region5
    $region4: #{tpu_custom_call.1} parent=1 // pred_region
      %20 = vsyncadd [#allocation4], 0
      %s21 = sshll.u32 %s0, 4
      %s22 = int_to_ptr.hbm [resolvable:$true] %s21
      %s23 = sshll.u32 [#allocation3], 4
      %s24 = int_to_ptr.vmem [resolvable:$true] %s23
      %29 = dma.hbm_to_vmem [thread:$0]  %s22, 256, %s24, [#allocation4], 64, 64, 4
    $region5: #{tpu_custom_call.1} parent=1 // pred_fallthru
      _
    // Predicated region
    $region6: #{tpu_custom_call.1} parent=1 // pred_check
      _
    $region7: #{tpu_custom_call.1} parent=1 // pred_check_branch
      %31 = sbr.rel (0) target = $region9
    $region8: #{tpu_custom_call.1} parent=1 // pred_region
      %33 = vsyncadd [#allocation7], 0
      %s34 = sshll.u32 %s1, 4
      %s35 = int_to_ptr.hbm [resolvable:$true] %s34
      %s36 = sshll.u32 [#allocation6], 4
      %s37 = int_to_ptr.vmem [resolvable:$true] %s36
      %42 = dma.hbm_to_vmem [thread:$0]  %s35, 256, %s37, [#allocation7], 64, 64, 4
    $region9: #{tpu_custom_call.1} parent=1 // pred_fallthru
      _
    // Predicated region
    $region10: #{tpu_custom_call.1} parent=1 // pred_check
      _
    $region11: #{tpu_custom_call.1} parent=1 // pred_check_branch
      %44 = sbr.rel (0) target = $region13
    $region12: #{tpu_custom_call.1} parent=1 // pred_region
      %46 = vsyncadd [#allocation7], 0
      %s47 = sshll.u32 %s2, 4
      %s48 = int_to_ptr.hbm [resolvable:$true] %s47
      %s49 = sshll.u32 [#allocation8], 4
      %s50 = int_to_ptr.vmem [resolvable:$true] %s49
      %55 = dma.hbm_to_vmem [thread:$0]  %s48, 256, %s50, [#allocation7], 64, 64, 4
    $region13: #{tpu_custom_call.1} parent=1 // pred_fallthru
      _
    // Predicated region
    $region14: #{tpu_custom_call.1} parent=1 // pred_check
      _
    $region15: #{tpu_custom_call.1} parent=1 // pred_check_branch
      %57 = sbr.rel (0) target = $region17
    $region16: #{tpu_custom_call.1} parent=1 // pred_region
      %59 = vsyncadd [#allocation10], 0
      %s60 = sshll.u32 %s3, 4
      %s61 = int_to_ptr.hbm [resolvable:$true] %s60
      %s62 = sshll.u32 [#allocation9], 4
      %s63 = int_to_ptr.vmem [resolvable:$true] %s62
      %68 = dma.hbm_to_vmem [thread:$0]  %s61, 4096, %s63, [#allocation10], 64, 64, 4
    $region17: #{tpu_custom_call.1} parent=1 // pred_fallthru
      _
    // Predicated region
    $region18: #{tpu_custom_call.1} parent=1 // pred_check
      _
    $region19: #{tpu_custom_call.1} parent=1 // pred_check_branch
      %70 = sbr.rel (0) target = $region21
    $region20: #{tpu_custom_call.1} parent=1 // pred_region
      %72 = vsyncadd [#allocation10], 0
      %s73 = sshll.u32 %s4, 4
      %s74 = int_to_ptr.hbm [resolvable:$true] %s73
      %s75 = sshll.u32 [#allocation11], 4
      %s76 = int_to_ptr.vmem [resolvable:$true] %s75
      %81 = dma.hbm_to_vmem [thread:$0]  %s74, 1024, %s76, [#allocation10], 64, 64, 4
    $region21: #{tpu_custom_call.1} parent=1 // pred_fallthru
      _
    // Predicated region
    $region22: #{tpu_custom_call.1} parent=1 // pred_check
      _
    $region23: #{tpu_custom_call.1} parent=1 // pred_check_branch
      %83 = sbr.rel (0) target = $region25
    $region24: #{tpu_custom_call.1} parent=1 // pred_region
      _
    $region25: #{tpu_custom_call.1} parent=1 // pred_fallthru
      _
    // Predicated region
    $region26: #{tpu_custom_call.1} parent=1 // pred_check
      _
    $region27: #{tpu_custom_call.1} parent=1 // pred_check_branch
      %85 = sbr.rel (0) target = $region29
    $region28: #{tpu_custom_call.1} parent=1 // pred_region
      %87 = vsyncadd [#allocation13], 0
      %s88 = sshll.u32 %s6, 4
      %s89 = int_to_ptr.hbm [resolvable:$true] %s88
      %s90 = sshll.u32 [#allocation12], 4
      %s91 = int_to_ptr.vmem [resolvable:$true] %s90
      %96 = dma.hbm_to_vmem [thread:$0]  %s89, 256, %s91, [#allocation13], 64, 64, 4
    $region29: #{tpu_custom_call.1} parent=1 // pred_fallthru
      _
    // Predicated region
    $region30: #{tpu_custom_call.1} parent=1 // pred_check
      _
    $region31: #{tpu_custom_call.1} parent=1 // pred_check_branch
      %98 = sbr.rel (0) target = $region33
    $region32: #{tpu_custom_call.1} parent=1 // pred_region
      %100 = dma.done [#allocation4], 256
    $region33: #{tpu_custom_call.1} parent=1 // pred_fallthru
      _
    // Predicated region
    $region34: #{tpu_custom_call.1} parent=1 // pred_check
      _
    $region35: #{tpu_custom_call.1} parent=1 // pred_check_branch
      %102 = sbr.rel (0) target = $region37
    $region36: #{tpu_custom_call.1} parent=1 // pred_region
      %104 = dma.done [#allocation7], 256
    $region37: #{tpu_custom_call.1} parent=1 // pred_fallthru
      _
    // Predicated region
    $region38: #{tpu_custom_call.1} parent=1 // pred_check
      _
    $region39: #{tpu_custom_call.1} parent=1 // pred_check_branch
      %106 = sbr.rel (0) target = $region41
    $region40: #{tpu_custom_call.1} parent=1 // pred_region
      %108 = dma.done [#allocation7], 256
    $region41: #{tpu_custom_call.1} parent=1 // pred_fallthru
      _
    // Predicated region
    $region42: #{tpu_custom_call.1} parent=1 // pred_check
      _
    $region43: #{tpu_custom_call.1} parent=1 // pred_check_branch
      %110 = sbr.rel (0) target = $region45
    $region44: #{tpu_custom_call.1} parent=1 // pred_region
      %112 = dma.done [#allocation10], 4096
    $region45: #{tpu_custom_call.1} parent=1 // pred_fallthru
      _
    // Predicated region
    $region46: #{tpu_custom_call.1} parent=1 // pred_check
      _
    $region47: #{tpu_custom_call.1} parent=1 // pred_check_branch
      %114 = sbr.rel (0) target = $region49
    $region48: #{tpu_custom_call.1} parent=1 // pred_region
      %116 = dma.done [#allocation10], 1024
    $region49: #{tpu_custom_call.1} parent=1 // pred_fallthru
      _
    // Predicated region
    $region50: #{tpu_custom_call.1} parent=1 // pred_check
      _
    $region51: #{tpu_custom_call.1} parent=1 // pred_check_branch
      %118 = sbr.rel (0) target = $region53
    $region52: #{tpu_custom_call.1} parent=1 // pred_region
      %120 = dma.done [#allocation13], 256
    $region53: #{tpu_custom_call.1} parent=1 // pred_fallthru
      _
    %p121 = scmp.eq.s32.totalorder 0, 0
    // Predicated region
    $region54: #{tpu_custom_call.1} parent=1 // pred_check
      %p122 = pneg %p121
    $region55: #{tpu_custom_call.1} parent=1 // pred_check_branch
      %124 = sbr.rel (%p122) target = $region57
    $region56: #{tpu_custom_call.1} parent=1 // pred_region
      %v125 = vld [vmem:[#allocation6] sm:$0xf]
      %v126 = vld [vmem:[#allocation6 + $0x4] sm:$0xf]
      %v127 = vld [vmem:[#allocation6 + $0x8] sm:$0xf]
      %v128 = vld [vmem:[#allocation6 + $0xc] sm:$0xf]
      %v129 = vld [vmem:[#allocation9] sm:$0xf]
      %v130 = vld [vmem:[#allocation9 + $0x4] sm:$0xf]
      %v131 = vld [vmem:[#allocation9 + $0x8] sm:$0xf]
      %v132 = vld [vmem:[#allocation9 + $0xc] sm:$0xf]
      %v133 = vld [vmem:[#allocation9 + $0x10] sm:$0xf]
      %v134 = vld [vmem:[#allocation9 + $0x14] sm:$0xf]
      %v135 = vld [vmem:[#allocation9 + $0x18] sm:$0xf]
      %v136 = vld [vmem:[#allocation9 + $0x1c] sm:$0xf]
      %v137 = vld [vmem:[#allocation9 + $0x20] sm:$0xf]
      %v138 = vld [vmem:[#allocation9 + $0x24] sm:$0xf]
      %v139 = vld [vmem:[#allocation9 + $0x28] sm:$0xf]
      %v140 = vld [vmem:[#allocation9 + $0x2c] sm:$0xf]
      %v141 = vld [vmem:[#allocation9 + $0x30] sm:$0xf]
      %v142 = vld [vmem:[#allocation9 + $0x34] sm:$0xf]
      %v143 = vld [vmem:[#allocation9 + $0x38] sm:$0xf]
      %v144 = vld [vmem:[#allocation9 + $0x3c] sm:$0xf]
      %v149 = vunpack.c.l.b16 %v125
      %v150 = vunpack.c.l.b16 %v126
      %v151 = vunpack.c.l.b16 %v127
      %v152 = vunpack.c.l.b16 %v128
      %v153 = vpack.c.b16 %v150, %v149
      %v154 = vpack.c.b16 %v152, %v151
      %v173 = vunpack.c.l.b16 %v129
      %v174 = vunpack.c.l.b16 %v130
      %v175 = vunpack.c.l.b16 %v131
      %v176 = vunpack.c.l.b16 %v132
      %v177 = vunpack.c.l.b16 %v133
      %v178 = vunpack.c.l.b16 %v134
      %v179 = vunpack.c.l.b16 %v135
      %v180 = vunpack.c.l.b16 %v136
      %v181 = vunpack.c.l.b16 %v137
      %v182 = vunpack.c.l.b16 %v138
      %v183 = vunpack.c.l.b16 %v139
      %v184 = vunpack.c.l.b16 %v140
      %v185 = vunpack.c.l.b16 %v141
      %v186 = vunpack.c.l.b16 %v142
      %v187 = vunpack.c.l.b16 %v143
      %v188 = vunpack.c.l.b16 %v144
      %v189 = vpack.c.b16 %v174, %v173
      %v190 = vpack.c.b16 %v176, %v175
      %v191 = vpack.c.b16 %v178, %v177
      %v192 = vpack.c.b16 %v180, %v179
      %v193 = vpack.c.b16 %v182, %v181
      %v194 = vpack.c.b16 %v184, %v183
      %v195 = vpack.c.b16 %v186, %v185
      %v196 = vpack.c.b16 %v188, %v187
      %205 = vmatpush.bf16.msra.mxu0 %v196
      %206 = vmatpush.bf16.msra.mxu0 %v195
      %207 = vmatpush.bf16.msra.mxu0 %v194
      %208 = vmatpush.bf16.msra.mxu0 %v193
      %209 = vmatpush.bf16.msra.mxu0 %v192
      %210 = vmatpush.bf16.msra.mxu0 %v191
      %211 = vmatpush.bf16.msra.mxu0 %v190
      %212 = vmatpush.bf16.msra.mxu0 %v189
      %213 = vmatmul.bf16.gmra.mxu0 %v153
      %v214 = vpop.f32.mrf.mxu0
      %v215 = vadd.f32 0.0, %v214
      %v216 = vpop.f32.mrf.mxu0
      %v217 = vadd.f32 0.0, %v216
      %218 = vmatmul.bf16.gmra.mxu0 %v154
      %v219 = vpop.f32.mrf.mxu0
      %v220 = vadd.f32 0.0, %v219
      %v221 = vpop.f32.mrf.mxu0
      %v222 = vadd.f32 0.0, %v221
      %223 = vdwg.mxu0
      %v224 = vpack.c.bf16 %v215, %v215
      %v225 = vpack.c.bf16 %v217, %v217
      %v226 = vpack.c.bf16 %v220, %v220
      %v227 = vpack.c.bf16 %v222, %v222
      %228 = vst [vmem:[#allocation2] sm:$0xf] %v224
      %229 = vst [vmem:[#allocation2 + $0x4] sm:$0xf] %v225
      %230 = vst [vmem:[#allocation2 + $0x8] sm:$0xf] %v226
      %231 = vst [vmem:[#allocation2 + $0xc] sm:$0xf] %v227
      %s232 = scalar_lea.vmem [#allocation9], 64
      %v233 = vld [vmem:[%s232] sm:$0xf]
      %v234 = vld [vmem:[%s232 + $0x4] sm:$0xf]
      %v235 = vld [vmem:[%s232 + $0x8] sm:$0xf]
      %v236 = vld [vmem:[%s232 + $0xc] sm:$0xf]
      %v237 = vld [vmem:[%s232 + $0x10] sm:$0xf]
      %v238 = vld [vmem:[%s232 + $0x14] sm:$0xf]
      %v239 = vld [vmem:[%s232 + $0x18] sm:$0xf]
      %v240 = vld [vmem:[%s232 + $0x1c] sm:$0xf]
      %v241 = vld [vmem:[%s232 + $0x20] sm:$0xf]
      %v242 = vld [vmem:[%s232 + $0x24] sm:$0xf]
      %v243 = vld [vmem:[%s232 + $0x28] sm:$0xf]
      %v244 = vld [vmem:[%s232 + $0x2c] sm:$0xf]
      %v245 = vld [vmem:[%s232 + $0x30] sm:$0xf]
      %v246 = vld [vmem:[%s232 + $0x34] sm:$0xf]
      %v247 = vld [vmem:[%s232 + $0x38] sm:$0xf]
      %v248 = vld [vmem:[%s232 + $0x3c] sm:$0xf]
      %v265 = vunpack.c.l.b16 %v233
      %v266 = vunpack.c.l.b16 %v234
      %v267 = vunpack.c.l.b16 %v235
      %v268 = vunpack.c.l.b16 %v236
      %v269 = vunpack.c.l.b16 %v237
      %v270 = vunpack.c.l.b16 %v238
      %v271 = vunpack.c.l.b16 %v239
      %v272 = vunpack.c.l.b16 %v240
      %v273 = vunpack.c.l.b16 %v241
      %v274 = vunpack.c.l.b16 %v242
      %v275 = vunpack.c.l.b16 %v243
      %v276 = vunpack.c.l.b16 %v244
      %v277 = vunpack.c.l.b16 %v245
      %v278 = vunpack.c.l.b16 %v246
      %v279 = vunpack.c.l.b16 %v247
      %v280 = vunpack.c.l.b16 %v248
      %v281 = vpack.c.b16 %v266, %v265
      %v282 = vpack.c.b16 %v268, %v267
      %v283 = vpack.c.b16 %v270, %v269
      %v284 = vpack.c.b16 %v272, %v271
      %v285 = vpack.c.b16 %v274, %v273
      %v286 = vpack.c.b16 %v276, %v275
      %v287 = vpack.c.b16 %v278, %v277
      %v288 = vpack.c.b16 %v280, %v279
      %297 = vmatpush.bf16.msra.mxu0 %v288
      %298 = vmatpush.bf16.msra.mxu0 %v287
      %299 = vmatpush.bf16.msra.mxu0 %v286
      %300 = vmatpush.bf16.msra.mxu0 %v285
      %301 = vmatpush.bf16.msra.mxu0 %v284
      %302 = vmatpush.bf16.msra.mxu0 %v283
      %303 = vmatpush.bf16.msra.mxu0 %v282
      %304 = vmatpush.bf16.msra.mxu0 %v281
      %305 = vmatmul.bf16.gmra.mxu0 %v153
      %v306 = vpop.f32.mrf.mxu0
      %v307 = vadd.f32 0.0, %v306
      %v308 = vpop.f32.mrf.mxu0
      %v309 = vadd.f32 0.0, %v308
      %310 = vmatmul.bf16.gmra.mxu0 %v154
      %v311 = vpop.f32.mrf.mxu0
      %v312 = vadd.f32 0.0, %v311
      %v313 = vpop.f32.mrf.mxu0
      %v314 = vadd.f32 0.0, %v313
      %315 = vdwg.mxu0
      %v316 = vpack.c.bf16 %v307, %v307
      %v317 = vpack.c.bf16 %v309, %v309
      %v318 = vpack.c.bf16 %v312, %v312
      %v319 = vpack.c.bf16 %v314, %v314
      %320 = vst [vmem:[#allocation2 + $0x10] sm:$0xf] %v316
      %321 = vst [vmem:[#allocation2 + $0x14] sm:$0xf] %v317
      %322 = vst [vmem:[#allocation2 + $0x18] sm:$0xf] %v318
      %323 = vst [vmem:[#allocation2 + $0x1c] sm:$0xf] %v319
      %s324 = scalar_lea.vmem [#allocation9], 128
      %v325 = vld [vmem:[%s324] sm:$0xf]
      %v326 = vld [vmem:[%s324 + $0x4] sm:$0xf]
      %v327 = vld [vmem:[%s324 + $0x8] sm:$0xf]
      %v328 = vld [vmem:[%s324 + $0xc] sm:$0xf]
      %v329 = vld [vmem:[%s324 + $0x10] sm:$0xf]
      %v330 = vld [vmem:[%s324 + $0x14] sm:$0xf]
      %v331 = vld [vmem:[%s324 + $0x18] sm:$0xf]
      %v332 = vld [vmem:[%s324 + $0x1c] sm:$0xf]
      %v333 = vld [vmem:[%s324 + $0x20] sm:$0xf]
      %v334 = vld [vmem:[%s324 + $0x24] sm:$0xf]
      %v335 = vld [vmem:[%s324 + $0x28] sm:$0xf]
      %v336 = vld [vmem:[%s324 + $0x2c] sm:$0xf]
      %v337 = vld [vmem:[%s324 + $0x30] sm:$0xf]
      %v338 = vld [vmem:[%s324 + $0x34] sm:$0xf]
      %v339 = vld [vmem:[%s324 + $0x38] sm:$0xf]
      %v340 = vld [vmem:[%s324 + $0x3c] sm:$0xf]
      %v357 = vunpack.c.l.b16 %v325
      %v358 = vunpack.c.l.b16 %v326
      %v359 = vunpack.c.l.b16 %v327
      %v360 = vunpack.c.l.b16 %v328
      %v361 = vunpack.c.l.b16 %v329
      %v362 = vunpack.c.l.b16 %v330
      %v363 = vunpack.c.l.b16 %v331
      %v364 = vunpack.c.l.b16 %v332
      %v365 = vunpack.c.l.b16 %v333
      %v366 = vunpack.c.l.b16 %v334
      %v367 = vunpack.c.l.b16 %v335
      %v368 = vunpack.c.l.b16 %v336
      %v369 = vunpack.c.l.b16 %v337
      %v370 = vunpack.c.l.b16 %v338
      %v371 = vunpack.c.l.b16 %v339
      %v372 = vunpack.c.l.b16 %v340
      %v373 = vpack.c.b16 %v358, %v357
      %v374 = vpack.c.b16 %v360, %v359
      %v375 = vpack.c.b16 %v362, %v361
      %v376 = vpack.c.b16 %v364, %v363
      %v377 = vpack.c.b16 %v366, %v365
      %v378 = vpack.c.b16 %v368, %v367
      %v379 = vpack.c.b16 %v370, %v369
      %v380 = vpack.c.b16 %v372, %v371
      %389 = vmatpush.bf16.msra.mxu0 %v380
      %390 = vmatpush.bf16.msra.mxu0 %v379
      %391 = vmatpush.bf16.msra.mxu0 %v378
      %392 = vmatpush.bf16.msra.mxu0 %v377
      %393 = vmatpush.bf16.msra.mxu0 %v376
      %394 = vmatpush.bf16.msra.mxu0 %v375
      %395 = vmatpush.bf16.msra.mxu0 %v374
      %396 = vmatpush.bf16.msra.mxu0 %v373
      %397 = vmatmul.bf16.gmra.mxu0 %v153
      %v398 = vpop.f32.mrf.mxu0
      %v399 = vadd.f32 0.0, %v398
      %v400 = vpop.f32.mrf.mxu0
      %v401 = vadd.f32 0.0, %v400
      %402 = vmatmul.bf16.gmra.mxu0 %v154
      %v403 = vpop.f32.mrf.mxu0
      %v404 = vadd.f32 0.0, %v403
      %v405 = vpop.f32.mrf.mxu0
      %v406 = vadd.f32 0.0, %v405
      %407 = vdwg.mxu0
      %v408 = vpack.c.bf16 %v399, %v399
      %v409 = vpack.c.bf16 %v401, %v401
      %v410 = vpack.c.bf16 %v404, %v404
      %v411 = vpack.c.bf16 %v406, %v406
      %412 = vst [vmem:[#allocation2 + $0x20] sm:$0xf] %v408
      %413 = vst [vmem:[#allocation2 + $0x24] sm:$0xf] %v409
      %414 = vst [vmem:[#allocation2 + $0x28] sm:$0xf] %v410
      %415 = vst [vmem:[#allocation2 + $0x2c] sm:$0xf] %v411
      %s416 = scalar_lea.vmem [#allocation9], 192
      %v417 = vld [vmem:[%s416] sm:$0xf]
      %v418 = vld [vmem:[%s416 + $0x4] sm:$0xf]
      %v419 = vld [vmem:[%s416 + $0x8] sm:$0xf]
      %v420 = vld [vmem:[%s416 + $0xc] sm:$0xf]
      %v421 = vld [vmem:[%s416 + $0x10] sm:$0xf]
      %v422 = vld [vmem:[%s416 + $0x14] sm:$0xf]
      %v423 = vld [vmem:[%s416 + $0x18] sm:$0xf]
      %v424 = vld [vmem:[%s416 + $0x1c] sm:$0xf]
      %v425 = vld [vmem:[%s416 + $0x20] sm:$0xf]
      %v426 = vld [vmem:[%s416 + $0x24] sm:$0xf]
      %v427 = vld [vmem:[%s416 + $0x28] sm:$0xf]
      %v428 = vld [vmem:[%s416 + $0x2c] sm:$0xf]
      %v429 = vld [vmem:[%s416 + $0x30] sm:$0xf]
      %v430 = vld [vmem:[%s416 + $0x34] sm:$0xf]
      %v431 = vld [vmem:[%s416 + $0x38] sm:$0xf]
      %v432 = vld [vmem:[%s416 + $0x3c] sm:$0xf]
      %v449 = vunpack.c.l.b16 %v417
      %v450 = vunpack.c.l.b16 %v418
      %v451 = vunpack.c.l.b16 %v419
      %v452 = vunpack.c.l.b16 %v420
      %v453 = vunpack.c.l.b16 %v421
      %v454 = vunpack.c.l.b16 %v422
      %v455 = vunpack.c.l.b16 %v423
      %v456 = vunpack.c.l.b16 %v424
      %v457 = vunpack.c.l.b16 %v425
      %v458 = vunpack.c.l.b16 %v426
      %v459 = vunpack.c.l.b16 %v427
      %v460 = vunpack.c.l.b16 %v428
      %v461 = vunpack.c.l.b16 %v429
      %v462 = vunpack.c.l.b16 %v430
      %v463 = vunpack.c.l.b16 %v431
      %v464 = vunpack.c.l.b16 %v432
      %v465 = vpack.c.b16 %v450, %v449
      %v466 = vpack.c.b16 %v452, %v451
      %v467 = vpack.c.b16 %v454, %v453
      %v468 = vpack.c.b16 %v456, %v455
      %v469 = vpack.c.b16 %v458, %v457
      %v470 = vpack.c.b16 %v460, %v459
      %v471 = vpack.c.b16 %v462, %v461
      %v472 = vpack.c.b16 %v464, %v463
      %481 = vmatpush.bf16.msra.mxu0 %v472
      %482 = vmatpush.bf16.msra.mxu0 %v471
      %483 = vmatpush.bf16.msra.mxu0 %v470
      %484 = vmatpush.bf16.msra.mxu0 %v469
      %485 = vmatpush.bf16.msra.mxu0 %v468
      %486 = vmatpush.bf16.msra.mxu0 %v467
      %487 = vmatpush.bf16.msra.mxu0 %v466
      %488 = vmatpush.bf16.msra.mxu0 %v465
      %489 = vmatmul.bf16.gmra.mxu0 %v153
      %v490 = vpop.f32.mrf.mxu0
      %v491 = vadd.f32 0.0, %v490
      %v492 = vpop.f32.mrf.mxu0
      %v493 = vadd.f32 0.0, %v492
      %494 = vmatmul.bf16.gmra.mxu0 %v154
      %v495 = vpop.f32.mrf.mxu0
      %v496 = vadd.f32 0.0, %v495
      %v497 = vpop.f32.mrf.mxu0
      %v498 = vadd.f32 0.0, %v497
      %499 = vdwg.mxu0
      %v500 = vpack.c.bf16 %v491, %v491
      %v501 = vpack.c.bf16 %v493, %v493
      %v502 = vpack.c.bf16 %v496, %v496
      %v503 = vpack.c.bf16 %v498, %v498
      %504 = vst [vmem:[#allocation2 + $0x30] sm:$0xf] %v500
      %505 = vst [vmem:[#allocation2 + $0x34] sm:$0xf] %v501
      %506 = vst [vmem:[#allocation2 + $0x38] sm:$0xf] %v502
      %507 = vst [vmem:[#allocation2 + $0x3c] sm:$0xf] %v503
    $region57: #{tpu_custom_call.1} parent=1 // pred_fallthru
      _
    %v508 = vld [vmem:[#allocation3] sm:$0xf]
    %v509 = vld [vmem:[#allocation3 + $0x4] sm:$0xf]
    %v510 = vld [vmem:[#allocation3 + $0x8] sm:$0xf]
    %v511 = vld [vmem:[#allocation3 + $0xc] sm:$0xf]
    %v512 = vld [vmem:[#allocation2] sm:$0xf]
    %v513 = vld [vmem:[#allocation2 + $0x4] sm:$0xf]
    %v514 = vld [vmem:[#allocation2 + $0x8] sm:$0xf]
    %v515 = vld [vmem:[#allocation2 + $0xc] sm:$0xf]
    %v516 = vld [vmem:[#allocation2 + $0x10] sm:$0xf]
    %v517 = vld [vmem:[#allocation2 + $0x14] sm:$0xf]
    %v518 = vld [vmem:[#allocation2 + $0x18] sm:$0xf]
    %v519 = vld [vmem:[#allocation2 + $0x1c] sm:$0xf]
    %v520 = vld [vmem:[#allocation2 + $0x20] sm:$0xf]
    %v521 = vld [vmem:[#allocation2 + $0x24] sm:$0xf]
    %v522 = vld [vmem:[#allocation2 + $0x28] sm:$0xf]
    %v523 = vld [vmem:[#allocation2 + $0x2c] sm:$0xf]
    %v524 = vld [vmem:[#allocation2 + $0x30] sm:$0xf]
    %v525 = vld [vmem:[#allocation2 + $0x34] sm:$0xf]
    %v526 = vld [vmem:[#allocation2 + $0x38] sm:$0xf]
    %v527 = vld [vmem:[#allocation2 + $0x3c] sm:$0xf]
    %v528 = vld [vmem:[#allocation8] sm:$0xf]
    %v529 = vld [vmem:[#allocation8 + $0x4] sm:$0xf]
    %v530 = vld [vmem:[#allocation8 + $0x8] sm:$0xf]
    %v531 = vld [vmem:[#allocation8 + $0xc] sm:$0xf]
    %v532 = vld [vmem:[#allocation11] sm:$0xf]
    %v533 = vld [vmem:[#allocation11 + $0x4] sm:$0xf]
    %v534 = vld [vmem:[#allocation11 + $0x8] sm:$0xf]
    %v535 = vld [vmem:[#allocation11 + $0xc] sm:$0xf]
    %v536 = vld [vmem:[#allocation11 + $0x10] sm:$0xf]
    %v537 = vld [vmem:[#allocation11 + $0x14] sm:$0xf]
    %v538 = vld [vmem:[#allocation11 + $0x18] sm:$0xf]
    %v539 = vld [vmem:[#allocation11 + $0x1c] sm:$0xf]
    %v540 = vld [vmem:[#allocation11 + $0x20] sm:$0xf]
    %v541 = vld [vmem:[#allocation11 + $0x24] sm:$0xf]
    %v542 = vld [vmem:[#allocation11 + $0x28] sm:$0xf]
    %v543 = vld [vmem:[#allocation11 + $0x2c] sm:$0xf]
    %v544 = vld [vmem:[#allocation11 + $0x30] sm:$0xf]
    %v545 = vld [vmem:[#allocation11 + $0x34] sm:$0xf]
    %v546 = vld [vmem:[#allocation11 + $0x38] sm:$0xf]
    %v547 = vld [vmem:[#allocation11 + $0x3c] sm:$0xf]
    %v552 = vunpack.c.l.b16 %v528
    %v553 = vunpack.c.l.b16 %v529
    %v554 = vunpack.c.l.b16 %v530
    %v555 = vunpack.c.l.b16 %v531
    %v556 = vpack.c.b16 %v553, %v552
    %v557 = vpack.c.b16 %v555, %v554
    %v576 = vunpack.c.l.b16 %v532
    %v577 = vunpack.c.l.b16 %v533
    %v578 = vunpack.c.l.b16 %v534
    %v579 = vunpack.c.l.b16 %v535
    %v580 = vunpack.c.l.b16 %v536
    %v581 = vunpack.c.l.b16 %v537
    %v582 = vunpack.c.l.b16 %v538
    %v583 = vunpack.c.l.b16 %v539
    %v584 = vunpack.c.l.b16 %v540
    %v585 = vunpack.c.l.b16 %v541
    %v586 = vunpack.c.l.b16 %v542
    %v587 = vunpack.c.l.b16 %v543
    %v588 = vunpack.c.l.b16 %v544
    %v589 = vunpack.c.l.b16 %v545
    %v590 = vunpack.c.l.b16 %v546
    %v591 = vunpack.c.l.b16 %v547
    %v592 = vpack.c.b16 %v577, %v576
    %v593 = vpack.c.b16 %v579, %v578
    %v594 = vpack.c.b16 %v581, %v580
    %v595 = vpack.c.b16 %v583, %v582
    %v596 = vpack.c.b16 %v585, %v584
    %v597 = vpack.c.b16 %v587, %v586
    %v598 = vpack.c.b16 %v589, %v588
    %v599 = vpack.c.b16 %v591, %v590
    %608 = vmatpush.bf16.msra.mxu0 %v599
    %609 = vmatpush.bf16.msra.mxu0 %v598
    %610 = vmatpush.bf16.msra.mxu0 %v597
    %611 = vmatpush.bf16.msra.mxu0 %v596
    %612 = vmatpush.bf16.msra.mxu0 %v595
    %613 = vmatpush.bf16.msra.mxu0 %v594
    %614 = vmatpush.bf16.msra.mxu0 %v593
    %615 = vmatpush.bf16.msra.mxu0 %v592
    %616 = vmatmul.bf16.gmra.mxu0 %v556
    %v617 = vpop.f32.mrf.mxu0
    %v618 = vadd.f32 0.0, %v617
    %v619 = vpop.f32.mrf.mxu0
    %v620 = vadd.f32 0.0, %v619
    %621 = vmatmul.bf16.gmra.mxu0 %v557
    %v622 = vpop.f32.mrf.mxu0
    %v623 = vadd.f32 0.0, %v622
    %v624 = vpop.f32.mrf.mxu0
    %v625 = vadd.f32 0.0, %v624
    %626 = vdwg.mxu0
    %v631 = vunpack.c.l.b16 %v508
    %v632 = vunpack.c.l.b16 %v509
    %v633 = vunpack.c.l.b16 %v510
    %v634 = vunpack.c.l.b16 %v511
    %v635 = vpack.c.b16 %v632, %v631
    %v636 = vpack.c.b16 %v634, %v633
    %v655 = vunpack.c.l.b16 %v512
    %v656 = vunpack.c.l.b16 %v513
    %v657 = vunpack.c.l.b16 %v514
    %v658 = vunpack.c.l.b16 %v515
    %v659 = vunpack.c.l.b16 %v516
    %v660 = vunpack.c.l.b16 %v517
    %v661 = vunpack.c.l.b16 %v518
    %v662 = vunpack.c.l.b16 %v519
    %v663 = vunpack.c.l.b16 %v520
    %v664 = vunpack.c.l.b16 %v521
    %v665 = vunpack.c.l.b16 %v522
    %v666 = vunpack.c.l.b16 %v523
    %v667 = vunpack.c.l.b16 %v524
    %v668 = vunpack.c.l.b16 %v525
    %v669 = vunpack.c.l.b16 %v526
    %v670 = vunpack.c.l.b16 %v527
    %v671 = vpack.c.b16 %v656, %v655
    %v672 = vpack.c.b16 %v658, %v657
    %v673 = vpack.c.b16 %v660, %v659
    %v674 = vpack.c.b16 %v662, %v661
    %v675 = vpack.c.b16 %v664, %v663
    %v676 = vpack.c.b16 %v666, %v665
    %v677 = vpack.c.b16 %v668, %v667
    %v678 = vpack.c.b16 %v670, %v669
    %687 = vmatpush.bf16.msra.mxu0 %v678
    %688 = vmatpush.bf16.msra.mxu0 %v677
    %689 = vmatpush.bf16.msra.mxu0 %v676
    %690 = vmatpush.bf16.msra.mxu0 %v675
    %691 = vmatpush.bf16.msra.mxu0 %v674
    %692 = vmatpush.bf16.msra.mxu0 %v673
    %693 = vmatpush.bf16.msra.mxu0 %v672
    %694 = vmatpush.bf16.msra.mxu0 %v671
    %695 = vmatmul.bf16.gmra.mxu0 %v635
    %v696 = vpop.f32.mrf.mxu0
    %v697 = vadd.f32 %v618, %v696
    %v698 = vpop.f32.mrf.mxu0
    %v699 = vadd.f32 %v620, %v698
    %700 = vmatmul.bf16.gmra.mxu0 %v636
    %v701 = vpop.f32.mrf.mxu0
    %v702 = vadd.f32 %v623, %v701
    %v703 = vpop.f32.mrf.mxu0
    %v704 = vadd.f32 %v625, %v703
    %705 = vdwg.mxu0
    %v706 = vld [vmem:[%s5] sm:$0x1]
    %v708 = vperm.slane %v706, 0
    %v710 = vadd.f32 %v697, %v708
    %v711 = vadd.f32 %v699, %v708
    %v712 = vadd.f32 %v702, %v708
    %v713 = vadd.f32 %v704, %v708
    %v714 = vmax.f32 %v710, 0.0
    %v715 = vmax.f32 %v711, 0.0
    %v716 = vmax.f32 %v712, 0.0
    %v717 = vmax.f32 %v713, 0.0
    %v718 = vld [vmem:[#allocation12] sm:$0xf]
    %v719 = vld [vmem:[#allocation12 + $0x4] sm:$0xf]
    %v720 = vld [vmem:[#allocation12 + $0x8] sm:$0xf]
    %v721 = vld [vmem:[#allocation12 + $0xc] sm:$0xf]
    %v722 = vunpack.c.l.bf16 %v718
    %v723 = vunpack.c.l.bf16 %v719
    %v724 = vunpack.c.l.bf16 %v720
    %v725 = vunpack.c.l.bf16 %v721
    %v726 = vmul.f32 %v714, %v722
    %v727 = vmul.f32 %v715, %v723
    %v728 = vmul.f32 %v716, %v724
    %v729 = vmul.f32 %v717, %v725
    %v730 = vpack.c.bf16 %v726, %v726
    %v731 = vpack.c.bf16 %v727, %v727
    %v732 = vpack.c.bf16 %v728, %v728
    %v733 = vpack.c.bf16 %v729, %v729
    %734 = vst [vmem:[#allocation14] sm:$0xf] %v730
    %735 = vst [vmem:[#allocation14 + $0x4] sm:$0xf] %v731
    %736 = vst [vmem:[#allocation14 + $0x8] sm:$0xf] %v732
    %737 = vst [vmem:[#allocation14 + $0xc] sm:$0xf] %v733
    // Predicated region
    $region58: #{tpu_custom_call.1} parent=1 // pred_check
      _
    $region59: #{tpu_custom_call.1} parent=1 // pred_check_branch
      %739 = sbr.rel (0) target = $region61
    $region60: #{tpu_custom_call.1} parent=1 // pred_region
      %741 = vsyncadd [#allocation5], 0
      %s742 = sshll.u32 [#allocation14], 4
      %s743 = int_to_ptr.vmem [resolvable:$true] %s742
      %s744 = sshll.u32 %s7, 4
      %s745 = int_to_ptr.hbm [resolvable:$true] %s744
      %750 = dma.vmem_to_hbm [thread:$0]  %s743, 256, %s745, [#allocation5], 64, 64, 4
    $region61: #{tpu_custom_call.1} parent=1 // pred_fallthru
      _
    // Predicated region
    $region62: #{tpu_custom_call.1} parent=1 // pred_check
      _
    $region63: #{tpu_custom_call.1} parent=1 // pred_check_branch
      %752 = sbr.rel (0) target = $region65
    $region64: #{tpu_custom_call.1} parent=1 // pred_region
      %754 = dma.done [#allocation5], 256
    $region65: #{tpu_custom_call.1} parent=1 // pred_fallthru
      _
    %755 = vsyncpa [#allocation4], 1
    %756 = vsyncpa [#allocation7], 1
    %757 = vsyncpa [#allocation10], 1
    %758 = vsyncpa [#allocation13], 1
    %759 = vsyncpa [#allocation5], 1

</llo_original>
